<compile_context>
chip_gen: v7x
topology: tpu7x:2x2x1
jax: 0.10.0
libtpu: 0.0.40
codegen_flags: <defaults>
</compile_context>

<pallas_src>
import jax
import jax.numpy as jnp
from jax.experimental import pallas as pl
from jax.experimental.pallas import tpu as pltpu

_LANES = 128
_SUBLANES = 8


def _bce_weight_kernel(w_ref, o_ref, t_ref, out_ref):
    # out_ref's block index is constant along the trailing (reduction) grid
    # axis, so it stays resident in VMEM and doubles as the accumulator.
    @pl.when(pl.program_id(1) == 0)
    def _():
        out_ref[...] = jnp.zeros_like(out_ref)

    w = w_ref[...].astype(jnp.float32)
    o = o_ref[...].astype(jnp.float32)
    t = t_ref[...].astype(jnp.float32)

    # PyTorch clamps the log terms at -100 so output==0 / output==1 stay finite.
    # TODO(synk): ATen uses log1p(-output); jnp.log(1 - o) differs only for
    # output -> 0, where the -100 clamp dominates anyway.
    log_o = jnp.maximum(jnp.log(o), -100.0)
    log_1mo = jnp.maximum(jnp.log(1.0 - o), -100.0)

    # -w*(t*log(o) + (1-t)*log(1-o)), rewritten with one fewer mul/sub.
    loss = -w * (log_1mo + t * (log_o - log_1mo))

    # Fold (tile, 128) -> (8, 128) with cheap VPU adds into the persistent
    # output block; the single cross-lane reduce happens once in the wrapper.
    tile = w_ref.shape[0]
    out_ref[...] += jnp.sum(
        loss.reshape(tile // _SUBLANES, _SUBLANES, _LANES), axis=0
    )


def _bce_sum_jnp(w, o, t):
    """Plain-XLA weighted-BCE partial sum (for the tiny unaligned tail)."""
    w = w.astype(jnp.float32)
    o = o.astype(jnp.float32)
    t = t.astype(jnp.float32)
    log_o = jnp.maximum(jnp.log(o), -100.0)
    log_1mo = jnp.maximum(jnp.log(1.0 - o), -100.0)
    return jnp.sum(-w * (log_1mo + t * (log_o - log_1mo)))


def _auto_num_splits():
    """2 only on multi-TensorCore chips (v7x-class); conservative 1 otherwise."""
    try:
        info = pltpu.get_tpu_info()
    except Exception:
        return 1
    for attr in ("tensorcores_per_chip", "num_tensorcores_per_chip",
                 "num_cores_per_chip"):
        n = getattr(info, attr, None)
        if isinstance(n, int) and n >= 1:
            return 2 if n >= 2 else 1
    return 1


def weighted_bce_mean(weight, output, target, *, tile_rows=4096, num_splits=None):
    """Mean-reduced weighted BCE computed in a Pallas TPU kernel."""
    assert weight.shape == output.shape == target.shape
    total = int(output.size)
    assert total > 0

    w_flat = jnp.ravel(weight)
    o_flat = jnp.ravel(output)
    t_flat = jnp.ravel(target)

    rows = total // _LANES  # number of full 128-lane rows
    desired = max(_SUBLANES, (int(tile_rows) // _SUBLANES) * _SUBLANES)
    n_tiles = pl.cdiv(rows, desired) if rows > 0 else 0
    tile = (rows // n_tiles // _SUBLANES) * _SUBLANES if n_tiles > 0 else 0

    if tile == 0:
        # Fewer than 8*128 lane-aligned elements: not worth a kernel launch.
        return _bce_sum_jnp(w_flat, o_flat, t_flat) / jnp.float32(total)

    if num_splits is None:
        num_splits = _auto_num_splits()
    num_splits = max(1, int(num_splits))
    if num_splits > 1 and n_tiles % num_splits != 0:
        # Keep the grid exact: never re-read a clamped block just to mask it.
        num_splits = 1
    tiles_per_split = n_tiles // num_splits

    rows_cover = n_tiles * tile
    main_elems = rows_cover * _LANES

    if main_elems != total:
        # Remainder: < n_tiles*8 rows plus a <128-element lane tail — a tiny
        # fraction of the data, folded in with plain XLA (no full-array pad).
        tail_sum = _bce_sum_jnp(
            w_flat[main_elems:], o_flat[main_elems:], t_flat[main_elems:]
        )
        w_main = w_flat[:main_elems]
        o_main = o_flat[:main_elems]
        t_main = t_flat[:main_elems]
    else:
        tail_sum = jnp.float32(0.0)
        w_main, o_main, t_main = w_flat, o_flat, t_flat

    # Keep native dtype: the f32 upcast happens on-chip, so bf16 inputs only
    # move half the HBM bytes.  The reshape is a free layout-preserving view.
    w2 = w_main.reshape(rows_cover, _LANES)
    o2 = o_main.reshape(rows_cover, _LANES)
    t2 = t_main.reshape(rows_cover, _LANES)

    def in_map(s, j):
        return (s * tiles_per_split + j, 0)

    block = pl.BlockSpec((tile, _LANES), in_map)

    in_itembytes = w2.dtype.itemsize + o2.dtype.itemsize + t2.dtype.itemsize
    # 3 double-buffered input tiles + resident output block, plus headroom.
    vmem_limit = int(2 * tile * _LANES * in_itembytes) + (8 << 20)

    cost = pl.CostEstimate(
        flops=6 * main_elems,
        transcendentals=2 * main_elems,
        bytes_accessed=main_elems * in_itembytes
        + num_splits * _SUBLANES * _LANES * 4,
    )

    # TODO(synk): on v7x, verify "parallel" actually shards the leading axis
    # across both TensorCores; if not, switch that axis to pltpu.CORE_PARALLEL.
    partials = pl.pallas_call(
        _bce_weight_kernel,
        out_shape=jax.ShapeDtypeStruct((num_splits * _SUBLANES, _LANES), jnp.float32),
        grid_spec=pltpu.PrefetchScalarGridSpec(
            num_scalar_prefetch=0,
            grid=(num_splits, tiles_per_split),
            in_specs=[block, block, block],
            out_specs=pl.BlockSpec((_SUBLANES, _LANES), lambda s, j: (s, 0)),
        ),
        compiler_params=pltpu.CompilerParams(
            dimension_semantics=("parallel", "arbitrary"),
            vmem_limit_bytes=vmem_limit,
        ),
        cost_estimate=cost,
    )(w2, o2, t2)

    # Single cheap cross-lane reduce + mean normalization outside the kernel.
    return (jnp.sum(partials) + tail_sum) / jnp.float32(total)


def weighted_bce_mean_ref(weight, output, target):
    log_o = jnp.maximum(jnp.log(output), -100.0)
    log_1mo = jnp.maximum(jnp.log(1.0 - output), -100.0)
    return jnp.mean(-weight * (target * log_o + (1.0 - target) * log_1mo))


if __name__ == "__main__":
    key = jax.random.PRNGKey(0)
    k_w, k_o, k_t = jax.random.split(key, 3)

    # Small NCHW-shaped inputs: batch=2, channels=4, spatial=16x16.
    shape = (2, 4, 16, 16)
    weight = jax.random.uniform(k_w, shape, jnp.float32, 0.5, 1.5)
    output = jax.nn.sigmoid(jax.random.normal(k_o, shape, jnp.float32))
    target = (jax.random.uniform(k_t, shape, jnp.float32) > 0.5).astype(jnp.float32)

    loss = weighted_bce_mean(weight, output, target)
    loss = jax.block_until_ready(loss)

    ref = weighted_bce_mean_ref(weight, output, target)
    assert jnp.allclose(loss, ref, rtol=1e-5, atol=1e-5), (loss, ref)

    print("KERNEL_OK")
</pallas_src>

<mosaic_0001>
module attributes {stable_mosaic.version = 11 : i64} {
  func.func @_bce_weight_kernel(%arg0: i32, %arg1: i32, %arg2: memref<16x128xf32, #tpu.memory_space<vmem>>, %arg3: memref<16x128xf32, #tpu.memory_space<vmem>>, %arg4: memref<16x128xf32, #tpu.memory_space<vmem>>, %arg5: memref<8x128xf32, #tpu.memory_space<vmem>>) attributes {dimension_semantics = [#tpu.dimension_semantics<parallel>, #tpu.dimension_semantics<arbitrary>], iteration_bounds = array<i64: 1, 1>, scalar_prefetch = 0 : i64, scratch_operands = 0 : i64, tpu.core_type = #tpu.core_type<tc>, window_params = [{transform_indices = @transform_0, window_bounds = array<i64: 16, 128>}, {transform_indices = @transform_1, window_bounds = array<i64: 16, 128>}, {transform_indices = @transform_2, window_bounds = array<i64: 16, 128>}, {transform_indices = @transform_3, window_bounds = array<i64: 8, 128>}]} {
    %c0_i32 = arith.constant 0 : i32
    %0 = arith.cmpi eq, %arg1, %c0_i32 : i32
    %1 = arith.extui %0 : i1 to i32
    %c0_i32_0 = arith.constant 0 : i32
    %2 = arith.cmpi ne, %1, %c0_i32_0 : i32
    scf.if %2 {
      %cst_14 = arith.constant 0.000000e+00 : f32
      %25 = vector.broadcast %cst_14 : f32 to vector<8x128xf32>
      %c0_15 = arith.constant 0 : index
      %c0_16 = arith.constant 0 : index
      %26 = vector.load %arg5[%c0_15, %c0_16] : memref<8x128xf32, #tpu.memory_space<vmem>>, vector<8x128xf32>
      tpu.vector_store %arg5[%c0_15, %c0_16], %25 {strides = array<i32>} : memref<8x128xf32, #tpu.memory_space<vmem>>, vector<8x128xf32>,
    } else {
    }
    %c0 = arith.constant 0 : index
    %c0_1 = arith.constant 0 : index
    %3 = vector.load %arg2[%c0, %c0_1] : memref<16x128xf32, #tpu.memory_space<vmem>>, vector<16x128xf32>
    %c0_2 = arith.constant 0 : index
    %c0_3 = arith.constant 0 : index
    %4 = vector.load %arg3[%c0_2, %c0_3] : memref<16x128xf32, #tpu.memory_space<vmem>>, vector<16x128xf32>
    %c0_4 = arith.constant 0 : index
    %c0_5 = arith.constant 0 : index
    %5 = vector.load %arg4[%c0_4, %c0_5] : memref<16x128xf32, #tpu.memory_space<vmem>>, vector<16x128xf32>
    %6 = math.log %4 : vector<16x128xf32>
    %cst = arith.constant -1.000000e+02 : f32
    %7 = vector.broadcast %cst : f32 to vector<16x128xf32>
    %8 = arith.maximumf %6, %7 : vector<16x128xf32>
    %cst_6 = arith.constant 1.000000e+00 : f32
    %9 = vector.broadcast %cst_6 : f32 to vector<16x128xf32>
    %10 = arith.subf %9, %4 : vector<16x128xf32>
    %11 = math.log %10 : vector<16x128xf32>
    %cst_7 = arith.constant -1.000000e+02 : f32
    %12 = vector.broadcast %cst_7 : f32 to vector<16x128xf32>
    %13 = arith.maximumf %11, %12 : vector<16x128xf32>
    %cst_8 = arith.constant 0.000000e+00 : f32
    %14 = vector.broadcast %cst_8 : f32 to vector<16x128xf32>
    %15 = arith.subf %14, %3 : vector<16x128xf32>
    %16 = arith.subf %8, %13 : vector<16x128xf32>
    %17 = arith.mulf %5, %16 : vector<16x128xf32>
    %18 = arith.addf %13, %17 : vector<16x128xf32>
    %19 = arith.mulf %15, %18 : vector<16x128xf32>
    %c0_9 = arith.constant 0 : index
    %c0_10 = arith.constant 0 : index
    %20 = vector.load %arg5[%c0_9, %c0_10] : memref<8x128xf32, #tpu.memory_space<vmem>>, vector<8x128xf32>
    %21 = vector.shape_cast %19 : vector<16x128xf32> to vector<2x8x128xf32>
    %cst_11 = arith.constant dense<0.000000e+00> : vector<8x128xf32>
    %22 = vector.multi_reduction <add>, %21, %cst_11 [0] : vector<2x8x128xf32> to vector<8x128xf32>
    %23 = arith.addf %20, %22 : vector<8x128xf32>
    %c0_12 = arith.constant 0 : index
    %c0_13 = arith.constant 0 : index
    %24 = vector.load %arg5[%c0_12, %c0_13] : memref<8x128xf32, #tpu.memory_space<vmem>>, vector<8x128xf32>
    tpu.vector_store %arg5[%c0_12, %c0_13], %23 {strides = array<i32>} : memref<8x128xf32, #tpu.memory_space<vmem>>, vector<8x128xf32>,
    return
  }
  func.func @transform_0(%arg0: i32, %arg1: i32) -> (i32, i32) {
    %c1_i32 = arith.constant 1 : i32
    %0 = arith.muli %arg0, %c1_i32 : i32
    %1 = arith.addi %0, %arg1 : i32
    %c0_i32 = arith.constant 0 : i32
    %c0_i32_0 = arith.constant 0 : i32
    return %1, %c0_i32 : i32, i32
  }
  func.func @transform_1(%arg0: i32, %arg1: i32) -> (i32, i32) {
    %c1_i32 = arith.constant 1 : i32
    %0 = arith.muli %arg0, %c1_i32 : i32
    %1 = arith.addi %0, %arg1 : i32
    %c0_i32 = arith.constant 0 : i32
    %c0_i32_0 = arith.constant 0 : i32
    return %1, %c0_i32 : i32, i32
  }
  func.func @transform_2(%arg0: i32, %arg1: i32) -> (i32, i32) {
    %c1_i32 = arith.constant 1 : i32
    %0 = arith.muli %arg0, %c1_i32 : i32
    %1 = arith.addi %0, %arg1 : i32
    %c0_i32 = arith.constant 0 : i32
    %c0_i32_0 = arith.constant 0 : i32
    return %1, %c0_i32 : i32, i32
  }
  func.func @transform_3(%arg0: i32, %arg1: i32) -> (i32, i32) {
    %c0_i32 = arith.constant 0 : i32
    %c0_i32_0 = arith.constant 0 : i32
    return %arg0, %c0_i32 : i32, i32
  }
}

</mosaic_0001>

<llo_original>
// kernel: tpu_custom_call.1
$region0: #{tpu_custom_call.1}
  #allocation0 [shape = 'u32[]', space=smem, size = 0x4, offset = 0x4, fixed_abs, tag = 'smem constant byte address 0x4 - core index']
  #allocation1 [shape = 'u32[144,128]{1,0:T(1,128)}', space=vmem, size = 0x12000, scoped, tag = 'internal scratch']
  %s0 = inlined_call_operand.hbm [shape: f32[16,128], index: 0, kind: input, shape index: {}]
  %s1 = inlined_call_operand.hbm [shape: f32[16,128], index: 1, kind: input, shape index: {}]
  %s2 = inlined_call_operand.hbm [shape: f32[16,128], index: 2, kind: input, shape index: {}]
  %s3 = inlined_call_operand.hbm [shape: f32[8,128], index: 3, kind: output, shape index: {}]
  %s4 = sld [smem:[#allocation0]]
  $region38: #{tpu_custom_call.1} parent=0
    _
  %s6 = ssub.s32 1, %s4
  %s7 = scalar_select 0, %s6, %s4
  $region1: #{tpu_custom_call.1} parent=0
    #allocation2 [shape = 'u8[8192]{0}', space=vmem, size = 0x2000, scoped, tag = 'input window, operand 0, single buffered']
    #allocation3 [shape = 's32[1]{0}', space=sflag, size = 0x4, scoped, tag = 'scoped memory for tpu_custom_call.1']
    #allocation4 [shape = 's32[1]{0}', space=sflag, size = 0x4, scoped, tag = 'scoped memory for tpu_custom_call.1']
    #allocation5 [shape = 'u8[8192]{0}', space=vmem, size = 0x2000, scoped, tag = 'input window, operand 1, single buffered']
    #allocation6 [shape = 's32[1]{0}', space=sflag, size = 0x4, scoped, tag = 'scoped memory for tpu_custom_call.1']
    #allocation7 [shape = 'u8[8192]{0}', space=vmem, size = 0x2000, scoped, tag = 'input window, operand 2, single buffered']
    #allocation8 [shape = 'u8[4096]{0}', space=vmem, size = 0x1000, scoped, tag = 'output window, operand 0, single buffered']
    %8 = vsyncpa [#allocation3], 0
    %9 = vsyncpa [#allocation6], 0
    %10 = vsyncpa [#allocation4], 0
    // Predicated region
    $region2: #{tpu_custom_call.1} parent=1 // pred_check
      _
    $region3: #{tpu_custom_call.1} parent=1 // pred_check_branch
      %12 = sbr.rel (0) target = $region5
    $region4: #{tpu_custom_call.1} parent=1 // pred_region
      %s13 = sadd.s32 0, 0
      %s14 = smul.u32 2, %s13
      %s16 = ssub.s32 256, 256
      %17 = vsyncadd [#allocation3], %s16
      %s18 = smul.addr %s14, 128
      %s19 = scalar_lea.hbm %s0, %s18
      %s20 = sshll.u32 [#allocation2], 4
      %s21 = int_to_ptr.vmem [resolvable:$true] %s20
      %26 = dma.hbm_to_vmem [thread:$0]  %s19, 256, %s21, [#allocation3], 128, 128, 8
    $region5: #{tpu_custom_call.1} parent=1 // pred_fallthru
      _
    // Predicated region
    $region6: #{tpu_custom_call.1} parent=1 // pred_check
      _
    $region7: #{tpu_custom_call.1} parent=1 // pred_check_branch
      %28 = sbr.rel (0) target = $region9
    $region8: #{tpu_custom_call.1} parent=1 // pred_region
      %s29 = sadd.s32 0, 0
      %s30 = smul.u32 2, %s29
      %s32 = ssub.s32 256, 256
      %33 = vsyncadd [#allocation6], %s32
      %s34 = smul.addr %s30, 128
      %s35 = scalar_lea.hbm %s1, %s34
      %s36 = sshll.u32 [#allocation5], 4
      %s37 = int_to_ptr.vmem [resolvable:$true] %s36
      %42 = dma.hbm_to_vmem [thread:$0]  %s35, 256, %s37, [#allocation6], 128, 128, 8
    $region9: #{tpu_custom_call.1} parent=1 // pred_fallthru
      _
    // Predicated region
    $region10: #{tpu_custom_call.1} parent=1 // pred_check
      _
    $region11: #{tpu_custom_call.1} parent=1 // pred_check_branch
      %44 = sbr.rel (0) target = $region13
    $region12: #{tpu_custom_call.1} parent=1 // pred_region
      %s45 = sadd.s32 0, 0
      %s46 = smul.u32 2, %s45
      %s48 = ssub.s32 256, 256
      %49 = vsyncadd [#allocation6], %s48
      %s50 = smul.addr %s46, 128
      %s51 = scalar_lea.hbm %s2, %s50
      %s52 = sshll.u32 [#allocation7], 4
      %s53 = int_to_ptr.vmem [resolvable:$true] %s52
      %58 = dma.hbm_to_vmem [thread:$0]  %s51, 256, %s53, [#allocation6], 128, 128, 8
    $region13: #{tpu_custom_call.1} parent=1 // pred_fallthru
      _
    // Predicated region
    $region14: #{tpu_custom_call.1} parent=1 // pred_check
      _
    $region15: #{tpu_custom_call.1} parent=1 // pred_check_branch
      %60 = sbr.rel (0) target = $region17
    $region16: #{tpu_custom_call.1} parent=1 // pred_region
      %61 = dma.done [#allocation3], 256
    $region17: #{tpu_custom_call.1} parent=1 // pred_fallthru
      _
    // Predicated region
    $region18: #{tpu_custom_call.1} parent=1 // pred_check
      _
    $region19: #{tpu_custom_call.1} parent=1 // pred_check_branch
      %63 = sbr.rel (0) target = $region21
    $region20: #{tpu_custom_call.1} parent=1 // pred_region
      %64 = dma.done [#allocation6], 256
    $region21: #{tpu_custom_call.1} parent=1 // pred_fallthru
      _
    // Predicated region
    $region22: #{tpu_custom_call.1} parent=1 // pred_check
      _
    $region23: #{tpu_custom_call.1} parent=1 // pred_check_branch
      %66 = sbr.rel (0) target = $region25
    $region24: #{tpu_custom_call.1} parent=1 // pred_region
      %67 = dma.done [#allocation6], 256
    $region25: #{tpu_custom_call.1} parent=1 // pred_fallthru
      _
    %s68 = sadd.s32 0, 0
    %s69 = smul.u32 2, %s68
    %s70 = sadd.s32 0, 0
    %s71 = smul.u32 2, %s70
    %s72 = sadd.s32 0, 0
    %s73 = smul.u32 2, %s72
    %p74 = scmp.eq.s32.totalorder 0, 0
    // Predicated region
    $region26: #{tpu_custom_call.1} parent=1 // pred_check
      %p75 = pneg %p74
    $region27: #{tpu_custom_call.1} parent=1 // pred_check_branch
      %77 = sbr.rel (%p75) target = $region29
    $region28: #{tpu_custom_call.1} parent=1 // pred_region
      %78 = vst [vmem:[#allocation8] sm:$0xff] 0.0
    $region29: #{tpu_custom_call.1} parent=1 // pred_fallthru
      _
    %v79 = vld [vmem:[#allocation2] sm:$0xff]
    %v80 = vld [vmem:[#allocation2 + $0x8] sm:$0xff]
    %v81 = vld [vmem:[#allocation5] sm:$0xff]
    %v82 = vld [vmem:[#allocation5 + $0x8] sm:$0xff]
    %v83 = vld [vmem:[#allocation7] sm:$0xff]
    %v84 = vld [vmem:[#allocation7 + $0x8] sm:$0xff]
    %v85 = vlog2.pop %v81
    %v86 = vmul.f32 %v85, 0.6931472
    %v87 = vlog2.pop %v82
    %v88 = vmul.f32 %v87, 0.6931472
    %v89 = vmax.f32 %v86, -100.0
    %v90 = vmax.f32 %v88, -100.0
    %v91 = vsub.f32 1.0, %v81
    %v92 = vsub.f32 1.0, %v82
    %v93 = vlog2.pop %v91
    %v94 = vmul.f32 %v93, 0.6931472
    %v95 = vlog2.pop %v92
    %v96 = vmul.f32 %v95, 0.6931472
    %v97 = vmax.f32 %v94, -100.0
    %v98 = vmax.f32 %v96, -100.0
    %v99 = vsub.f32 0.0, %v79
    %v100 = vsub.f32 0.0, %v80
    %v101 = vsub.f32 %v89, %v97
    %v102 = vsub.f32 %v90, %v98
    %v103 = vmul.f32 %v83, %v101
    %v104 = vmul.f32 %v84, %v102
    %v105 = vadd.f32 %v97, %v103
    %v106 = vadd.f32 %v98, %v104
    %v107 = vmul.f32 %v99, %v105
    %v108 = vmul.f32 %v100, %v106
    %v109 = vld [vmem:[#allocation8] sm:$0xff]
    %v110 = vadd.f32 %v107, %v108
    %v111 = vadd.f32 %v109, %v110
    %112 = vst [vmem:[#allocation8] sm:$0xff] %v111
    // Predicated region
    $region30: #{tpu_custom_call.1} parent=1 // pred_check
      _
    $region31: #{tpu_custom_call.1} parent=1 // pred_check_branch
      %114 = sbr.rel (0) target = $region33
    $region32: #{tpu_custom_call.1} parent=1 // pred_region
      %s116 = ssub.s32 128, 128
      %117 = vsyncadd [#allocation4], %s116
      %s119 = sshll.u32 [#allocation8], 4
      %s120 = int_to_ptr.vmem [resolvable:$true] %s119
      %122 = dma.vmem_to_hbm [thread:$0]  %s120, 128, %s3, [#allocation4]
    $region33: #{tpu_custom_call.1} parent=1 // pred_fallthru
      _
    // Predicated region
    $region34: #{tpu_custom_call.1} parent=1 // pred_check
      _
    $region35: #{tpu_custom_call.1} parent=1 // pred_check_branch
      %124 = sbr.rel (0) target = $region37
    $region36: #{tpu_custom_call.1} parent=1 // pred_region
      %125 = dma.done [#allocation4], 128
    $region37: #{tpu_custom_call.1} parent=1 // pred_fallthru
      _
    %126 = vsyncpa [#allocation3], 1
    %127 = vsyncpa [#allocation6], 1
    %128 = vsyncpa [#allocation4], 1

</llo_original>
